<compile_context>
chip_gen: v5e
topology: v5e:2x2
jax: 0.10.0
libtpu: 0.0.40
codegen_flags: <defaults>
</compile_context>

<pallas_src>
import jax
import jax.numpy as jnp
from jax.experimental import pallas as pl
from jax.experimental.pallas import tpu as pltpu


def _round_up(x, m):
    return ((x + m - 1) // m) * m


def decoder_kernel(z_ref, w1_ref, b1_ref, w2_ref, b2_ref, out_ref):
    # bf16 MXU matmuls with f32 accumulation; all elementwise math in f32.
    z = z_ref[...]                                                      # (Bt, L) bf16
    h = jnp.dot(z, w1_ref[...], preferred_element_type=jnp.float32)    # (Bt, H) f32
    h = jnp.maximum(h + b1_ref[...], 0.0)                              # bias + ReLU
    o = jnp.dot(h.astype(jnp.bfloat16), w2_ref[...],
                preferred_element_type=jnp.float32)                    # (Bt, D) f32
    o = o + b2_ref[...]
    # sigmoid(o) = 0.5*tanh(0.5*o) + 0.5 : single EUP transcendental per element.
    out_ref[...] = 0.5 * jnp.tanh(0.5 * o) + 0.5


def decoder_forward(z, w1, b1, w2, b2, *, max_batch_tile=1024, no_grid_max=256):
    """z: (B, L); w1: (L, H); b1: (H,); w2: (H, D); b2: (D,) -> (B, D) f32."""
    B, L = z.shape
    H = w1.shape[1]
    D = w2.shape[1]

    # bf16 for the MXU inputs (weights + activations); biases stay f32.
    z_bf = z.astype(jnp.bfloat16)
    w1_bf = w1.astype(jnp.bfloat16)
    w2_bf = w2.astype(jnp.bfloat16)
    b1_2d = b1.reshape(1, H).astype(jnp.float32)
    b2_2d = b2.reshape(1, D).astype(jnp.float32)

    if B <= no_grid_max:
        # Tiny batch (latency path): single shot, everything resident in VMEM,
        # no grid bookkeeping.  Dominated by weight DMA (~74 KiB in bf16).
        # TODO(synk): if called repeatedly, a cross-call weight prefetch (P10)
        # would hide the weight load entirely.
        vmem = pl.BlockSpec(memory_space=pltpu.MemorySpace.VMEM)
        return pl.pallas_call(
            decoder_kernel,
            out_shape=jax.ShapeDtypeStruct((B, D), jnp.float32),
            in_specs=[vmem] * 5,
            out_specs=vmem,
        )(z_bf, w1_bf, b1_2d, w2_bf, b2_2d)

    # Large batch: tile rows.  Keep >= 2 grid steps (so v7x's two TensorCores
    # both get work via the "parallel" axis) but cap the tile at ~1024 rows
    # (f32 output double-buffered ~1.5 MiB -> far inside scoped VMEM on all
    # of v5e/v6e/v7x).  Edge block is handled by pl.cdiv + Pallas masking;
    # no host-side pad or post-hoc slice.
    batch_tile = min(max_batch_tile, _round_up(pl.cdiv(B, 2), 8))
    grid = (pl.cdiv(B, batch_tile),)
    return pl.pallas_call(
        decoder_kernel,
        out_shape=jax.ShapeDtypeStruct((B, D), jnp.float32),
        grid=grid,
        in_specs=[
            pl.BlockSpec((batch_tile, L), lambda i: (i, 0)),
            pl.BlockSpec((L, H), lambda i: (0, 0)),   # weights resident across tiles
            pl.BlockSpec((1, H), lambda i: (0, 0)),
            pl.BlockSpec((H, D), lambda i: (0, 0)),
            pl.BlockSpec((1, D), lambda i: (0, 0)),
        ],
        out_specs=pl.BlockSpec((batch_tile, D), lambda i: (i, 0)),
        compiler_params=pltpu.CompilerParams(
            dimension_semantics=("parallel",)),
    )(z_bf, w1_bf, b1_2d, w2_bf, b2_2d)


def init_decoder_params(key, latent_dims, hidden, input_size):
    """Deterministic init (matches nn.Linear's U(-1/sqrt(fan_in), 1/sqrt(fan_in)))."""
    k1, k2, k3, k4 = jax.random.split(key, 4)
    bound1 = 1.0 / (latent_dims ** 0.5)
    bound2 = 1.0 / (hidden ** 0.5)
    # stored as (in_features, out_features) == PyTorch weight.T
    w1 = jax.random.uniform(k1, (latent_dims, hidden), jnp.float32, -bound1, bound1)
    b1 = jax.random.uniform(k2, (hidden,), jnp.float32, -bound1, bound1)
    w2 = jax.random.uniform(k3, (hidden, input_size), jnp.float32, -bound2, bound2)
    b2 = jax.random.uniform(k4, (input_size,), jnp.float32, -bound2, bound2)
    return w1, b1, w2, b2


if __name__ == "__main__":
    # Shapes consistent with the module:
    #   N_MELS = 16, pow_size = 12 -> input_size = 192
    #   hidden = int(2/3 * 192) = 128, LATENT_DIMS = 32, batch = 2
    LATENT_DIMS = 32
    N_MELS = 16
    POW_SIZE = 12
    INPUT_SIZE = POW_SIZE * N_MELS          # 192
    HIDDEN = int(2 / 3 * INPUT_SIZE)        # 128
    BATCH = 2

    key = jax.random.PRNGKey(0)
    kz, kp, kz2 = jax.random.split(key, 3)
    z = jax.random.normal(kz, (BATCH, LATENT_DIMS), dtype=jnp.float32)
    w1, b1, w2, b2 = init_decoder_params(kp, LATENT_DIMS, HIDDEN, INPUT_SIZE)

    def ref_fwd(zz):
        return jax.nn.sigmoid(jnp.maximum(zz @ w1 + b1, 0.0) @ w2 + b2)

    # Tiny-batch (no-grid) path.
    out = jax.block_until_ready(decoder_forward(z, w1, b1, w2, b2))
    assert out.shape == (BATCH, INPUT_SIZE)
    # bf16 MXU inputs (f32 accumulate) -> small error in the pre-activation;
    # sigmoid derivative <= 0.25, so 5e-3 absolute tolerance has ample margin.
    assert jnp.allclose(out, ref_fwd(z), atol=5e-3, rtol=5e-3)

    # Grid path (tile split keeps >= 2 steps; also exercises non-tile-multiple B
    # and the pl.cdiv masked edge block).
    z_big = jax.random.normal(kz2, (385, LATENT_DIMS), dtype=jnp.float32)
    out_big = jax.block_until_ready(decoder_forward(z_big, w1, b1, w2, b2))
    assert out_big.shape == (385, INPUT_SIZE)
    assert jnp.allclose(out_big, ref_fwd(z_big), atol=5e-3, rtol=5e-3)

    print("KERNEL_OK")
</pallas_src>

<mosaic_0001>
module attributes {stable_mosaic.version = 11 : i64} {
  func.func @decoder_kernel(%arg0: memref<2x32xbf16, #tpu.memory_space<vmem>>, %arg1: memref<32x128xbf16, #tpu.memory_space<vmem>>, %arg2: memref<1x128xf32, #tpu.memory_space<vmem>>, %arg3: memref<128x192xbf16, #tpu.memory_space<vmem>>, %arg4: memref<1x192xf32, #tpu.memory_space<vmem>>, %arg5: memref<2x192xf32, #tpu.memory_space<vmem>>) attributes {dimension_semantics = [], scalar_prefetch = 0 : i64, scratch_operands = 0 : i64, tpu.core_type = #tpu.core_type<tc>} {
    %c0 = arith.constant 0 : index
    %c0_0 = arith.constant 0 : index
    %0 = vector.load %arg0[%c0, %c0_0] : memref<2x32xbf16, #tpu.memory_space<vmem>>, vector<2x32xbf16>
    %c0_1 = arith.constant 0 : index
    %c0_2 = arith.constant 0 : index
    %1 = vector.load %arg1[%c0_1, %c0_2] : memref<32x128xbf16, #tpu.memory_space<vmem>>, vector<32x128xbf16>
    %cst = arith.constant dense<0.000000e+00> : vector<2x128xf32>
    %2 = tpu.matmul %0, %1, %cst {dimension_numbers = #tpu.dot_dimension_numbers<[1], [0], [0], [1], [0, 0, 1, 1], [], []>} : vector<2x32xbf16>, vector<32x128xbf16>, vector<2x128xf32> -> vector<2x128xf32>
    %c0_3 = arith.constant 0 : index
    %c0_4 = arith.constant 0 : index
    %3 = vector.load %arg2[%c0_3, %c0_4] : memref<1x128xf32, #tpu.memory_space<vmem>>, vector<1x128xf32>
    %4 = vector.broadcast %3 : vector<1x128xf32> to vector<2x128xf32>
    %5 = arith.addf %2, %4 : vector<2x128xf32>
    %cst_5 = arith.constant 0.000000e+00 : f32
    %6 = vector.broadcast %cst_5 : f32 to vector<2x128xf32>
    %7 = arith.maximumf %5, %6 : vector<2x128xf32>
    %8 = arith.truncf %7 : vector<2x128xf32> to vector<2x128xbf16>
    %c0_6 = arith.constant 0 : index
    %c0_7 = arith.constant 0 : index
    %9 = vector.load %arg3[%c0_6, %c0_7] : memref<128x192xbf16, #tpu.memory_space<vmem>>, vector<128x192xbf16>
    %cst_8 = arith.constant dense<0.000000e+00> : vector<2x192xf32>
    %10 = tpu.matmul %8, %9, %cst_8 {dimension_numbers = #tpu.dot_dimension_numbers<[1], [0], [0], [1], [0, 0, 1, 1], [], []>} : vector<2x128xbf16>, vector<128x192xbf16>, vector<2x192xf32> -> vector<2x192xf32>
    %c0_9 = arith.constant 0 : index
    %c0_10 = arith.constant 0 : index
    %11 = vector.load %arg4[%c0_9, %c0_10] : memref<1x192xf32, #tpu.memory_space<vmem>>, vector<1x192xf32>
    %12 = vector.broadcast %11 : vector<1x192xf32> to vector<2x192xf32>
    %13 = arith.addf %10, %12 : vector<2x192xf32>
    %cst_11 = arith.constant 5.000000e-01 : f32
    %14 = vector.broadcast %cst_11 : f32 to vector<2x192xf32>
    %15 = arith.mulf %14, %13 : vector<2x192xf32>
    %16 = math.tanh %15 : vector<2x192xf32>
    %cst_12 = arith.constant 5.000000e-01 : f32
    %17 = vector.broadcast %cst_12 : f32 to vector<2x192xf32>
    %18 = arith.mulf %17, %16 : vector<2x192xf32>
    %cst_13 = arith.constant 5.000000e-01 : f32
    %19 = vector.broadcast %cst_13 : f32 to vector<2x192xf32>
    %20 = arith.addf %18, %19 : vector<2x192xf32>
    %c0_14 = arith.constant 0 : index
    %c0_15 = arith.constant 0 : index
    %21 = vector.load %arg5[%c0_14, %c0_15] : memref<2x192xf32, #tpu.memory_space<vmem>>, vector<2x192xf32>
    tpu.vector_store %arg5[%c0_14, %c0_15], %20 {strides = array<i32>} : memref<2x192xf32, #tpu.memory_space<vmem>>, vector<2x192xf32>,
    return
  }
}

</mosaic_0001>

<llo_original>
// kernel: tpu_custom_call.1
$region0: #{tpu_custom_call.1}
  #allocation0 [shape = 'u32[]', space=smem, size = 0x4, offset = 0x4, fixed_abs, tag = 'smem constant byte address 0x4 - core index']
  #allocation1 [shape = 'u32[72,128]{1,0:T(1,128)}', space=vmem, size = 0x9000, scoped, tag = 'internal scratch']
  %s0 = inlined_call_operand.vmem [shape: bf16[2,32], index: 0, kind: input, shape index: {}]
  %s1 = inlined_call_operand.vmem [shape: bf16[32,128], index: 1, kind: input, shape index: {}]
  %s2 = inlined_call_operand.vmem [shape: f32[1,128], index: 2, kind: input, shape index: {}]
  %s3 = inlined_call_operand.vmem [shape: bf16[128,192], index: 3, kind: input, shape index: {}]
  %s4 = inlined_call_operand.vmem [shape: f32[1,192], index: 4, kind: input, shape index: {}]
  %s5 = inlined_call_operand.hbm [shape: f32[2,192], index: 5, kind: output, shape index: {}]
  %s6 = sld [smem:[#allocation0]]
  $region30: #{tpu_custom_call.1} parent=0
    _
  %s8 = ssub.s32 1, %s6
  %s9 = scalar_select 0, %s8, %s6
  $region1: #{tpu_custom_call.1} parent=0
    #allocation2 [shape = 'u8[2048]{0}', space=vmem, size = 0x800, scoped, tag = 'output window, operand 0, single buffered']
    #allocation3 [shape = 's32[1]{0}', space=sflag, size = 0x4, scoped, tag = 'scoped memory for tpu_custom_call.1']
    %10 = vsyncpa [#allocation3], 0
    // Predicated region
    $region2: #{tpu_custom_call.1} parent=1 // pred_check
      _
    $region3: #{tpu_custom_call.1} parent=1 // pred_check_branch
      %12 = sbr.rel (0) target = $region5
    $region4: #{tpu_custom_call.1} parent=1 // pred_region
      _
    $region5: #{tpu_custom_call.1} parent=1 // pred_fallthru
      _
    // Predicated region
    $region6: #{tpu_custom_call.1} parent=1 // pred_check
      _
    $region7: #{tpu_custom_call.1} parent=1 // pred_check_branch
      %14 = sbr.rel (0) target = $region9
    $region8: #{tpu_custom_call.1} parent=1 // pred_region
      _
    $region9: #{tpu_custom_call.1} parent=1 // pred_fallthru
      _
    // Predicated region
    $region10: #{tpu_custom_call.1} parent=1 // pred_check
      _
    $region11: #{tpu_custom_call.1} parent=1 // pred_check_branch
      %16 = sbr.rel (0) target = $region13
    $region12: #{tpu_custom_call.1} parent=1 // pred_region
      _
    $region13: #{tpu_custom_call.1} parent=1 // pred_fallthru
      _
    // Predicated region
    $region14: #{tpu_custom_call.1} parent=1 // pred_check
      _
    $region15: #{tpu_custom_call.1} parent=1 // pred_check_branch
      %18 = sbr.rel (0) target = $region17
    $region16: #{tpu_custom_call.1} parent=1 // pred_region
      _
    $region17: #{tpu_custom_call.1} parent=1 // pred_fallthru
      _
    // Predicated region
    $region18: #{tpu_custom_call.1} parent=1 // pred_check
      _
    $region19: #{tpu_custom_call.1} parent=1 // pred_check_branch
      %20 = sbr.rel (0) target = $region21
    $region20: #{tpu_custom_call.1} parent=1 // pred_region
      _
    $region21: #{tpu_custom_call.1} parent=1 // pred_fallthru
      _
    %v22 = vld [vmem:[%s0] sm:$0x1]
    %v23 = vld [vmem:[%s1] sm:$0xf]
    %v24 = vld [vmem:[%s1 + $0x4] sm:$0xf]
    %v25 = vld [vmem:[%s1 + $0x8] sm:$0xf]
    %v26 = vld [vmem:[%s1 + $0xc] sm:$0xf]
    %v27 = vld [vmem:[%s2] sm:$0x1]
    %v29 = vperm.slane %v27, 0
    %v35 = vunpack.c.l.b16 %v23
    %v36 = vunpack.c.l.b16 %v24
    %v37 = vunpack.c.l.b16 %v25
    %v38 = vunpack.c.l.b16 %v26
    %v39 = vpack.c.b16 %v36, %v35
    %v40 = vpack.c.b16 %v38, %v37
    %vm43 = vcmask 261120
    %v45 = vsel %vm43, %v22, 0
    %47 = vmatpush.bf16.msra.mxu0 0
    %48 = vmatpush.bf16.msra.mxu0 0
    %49 = vmatpush.bf16.msra.mxu0 0
    %50 = vmatpush.bf16.msra.mxu0 0
    %51 = vmatpush.bf16.msra.mxu0 0
    %52 = vmatpush.bf16.msra.mxu0 0
    %53 = vmatpush.bf16.msra.mxu0 %v40
    %54 = vmatpush.bf16.msra.mxu0 %v39
    %55 = vmatmul.bf16.gmra.mxu0 %v45
    %v56 = vpop.f32.mrf.mxu0
    %v57 = vadd.f32 %v29, %v56
    %v58 = vpop.f32.mrf.mxu0
    %59 = vdwg.mxu0
    %v60 = vmax.f32 %v57, 0.0
    %v61 = vpack.c.bf16 %v60, %v60
    %v62 = vld [vmem:[%s3] sm:$0xff]
    %v63 = vld [vmem:[%s3 + $0x8] sm:$0xff]
    %v64 = vld [vmem:[%s3 + $0x10] sm:$0xff]
    %v65 = vld [vmem:[%s3 + $0x18] sm:$0xff]
    %v66 = vld [vmem:[%s3 + $0x20] sm:$0xff]
    %v67 = vld [vmem:[%s3 + $0x28] sm:$0xff]
    %v68 = vld [vmem:[%s3 + $0x30] sm:$0xff]
    %v69 = vld [vmem:[%s3 + $0x38] sm:$0xff]
    %v70 = vld [vmem:[%s3 + $0x40] sm:$0xff]
    %v71 = vld [vmem:[%s3 + $0x48] sm:$0xff]
    %v72 = vld [vmem:[%s3 + $0x50] sm:$0xff]
    %v73 = vld [vmem:[%s3 + $0x58] sm:$0xff]
    %v74 = vld [vmem:[%s3 + $0x60] sm:$0xff]
    %v75 = vld [vmem:[%s3 + $0x68] sm:$0xff]
    %v76 = vld [vmem:[%s3 + $0x70] sm:$0xff]
    %v77 = vld [vmem:[%s3 + $0x78] sm:$0xff]
    %v78 = vld [vmem:[%s4] sm:$0x3]
    %v80 = vperm.slane %v78, 0
    %v81 = vperm.slane %v78, 1
    %v100 = vunpack.c.l.b16 %v62
    %v101 = vunpack.c.h.b16 %v62
    %v102 = vunpack.c.l.b16 %v63
    %v103 = vunpack.c.h.b16 %v63
    %v104 = vunpack.c.l.b16 %v64
    %v105 = vunpack.c.h.b16 %v64
    %v106 = vunpack.c.l.b16 %v65
    %v107 = vunpack.c.h.b16 %v65
    %v108 = vunpack.c.l.b16 %v66
    %v109 = vunpack.c.h.b16 %v66
    %v110 = vunpack.c.l.b16 %v67
    %v111 = vunpack.c.h.b16 %v67
    %v112 = vunpack.c.l.b16 %v68
    %v113 = vunpack.c.h.b16 %v68
    %v114 = vunpack.c.l.b16 %v69
    %v115 = vunpack.c.h.b16 %v69
    %v116 = vunpack.c.l.b16 %v70
    %v117 = vunpack.c.h.b16 %v70
    %v118 = vunpack.c.l.b16 %v71
    %v119 = vunpack.c.h.b16 %v71
    %v120 = vunpack.c.l.b16 %v72
    %v121 = vunpack.c.h.b16 %v72
    %v122 = vunpack.c.l.b16 %v73
    %v123 = vunpack.c.h.b16 %v73
    %v124 = vunpack.c.l.b16 %v74
    %v125 = vunpack.c.h.b16 %v74
    %v126 = vunpack.c.l.b16 %v75
    %v127 = vunpack.c.h.b16 %v75
    %v128 = vunpack.c.l.b16 %v76
    %v129 = vunpack.c.h.b16 %v76
    %v130 = vunpack.c.l.b16 %v77
    %v131 = vunpack.c.h.b16 %v77
    %v132 = vpack.c.b16 %v102, %v100
    %v133 = vpack.c.b16 %v103, %v101
    %v134 = vpack.c.b16 %v106, %v104
    %v135 = vpack.c.b16 %v107, %v105
    %v136 = vpack.c.b16 %v110, %v108
    %v137 = vpack.c.b16 %v111, %v109
    %v138 = vpack.c.b16 %v114, %v112
    %v139 = vpack.c.b16 %v115, %v113
    %v140 = vpack.c.b16 %v118, %v116
    %v141 = vpack.c.b16 %v119, %v117
    %v142 = vpack.c.b16 %v122, %v120
    %v143 = vpack.c.b16 %v123, %v121
    %v144 = vpack.c.b16 %v126, %v124
    %v145 = vpack.c.b16 %v127, %v125
    %v146 = vpack.c.b16 %v130, %v128
    %v147 = vpack.c.b16 %v131, %v129
    %164 = vmatpush.bf16.msra.mxu0 %v146
    %165 = vmatpush.bf16.msra.mxu0 %v144
    %166 = vmatpush.bf16.msra.mxu0 %v142
    %167 = vmatpush.bf16.msra.mxu0 %v140
    %168 = vmatpush.bf16.msra.mxu0 %v138
    %169 = vmatpush.bf16.msra.mxu0 %v136
    %170 = vmatpush.bf16.msra.mxu0 %v134
    %171 = vmatpush.bf16.msra.mxu0 %v132
    %172 = vmatmul.bf16.gmra.mxu0 %v61
    %v173 = vpop.f32.mrf.mxu0
    %v174 = vadd.f32 %v80, %v173
    %v175 = vpop.f32.mrf.mxu0
    %176 = vdwg.mxu0
    %177 = vmatpush.bf16.msra.mxu0 %v147
    %178 = vmatpush.bf16.msra.mxu0 %v145
    %179 = vmatpush.bf16.msra.mxu0 %v143
    %180 = vmatpush.bf16.msra.mxu0 %v141
    %181 = vmatpush.bf16.msra.mxu0 %v139
    %182 = vmatpush.bf16.msra.mxu0 %v137
    %183 = vmatpush.bf16.msra.mxu0 %v135
    %184 = vmatpush.bf16.msra.mxu0 %v133
    %185 = vmatmul.bf16.gmra.mxu0 %v61
    %v186 = vpop.f32.mrf.mxu0
    %v187 = vadd.f32 %v81, %v186
    %v188 = vpop.f32.mrf.mxu0
    %189 = vdwg.mxu0
    %v190 = vmul.f32 %v174, 0.5
    %v191 = vmul.f32 %v187, 0.5
    %v192 = vtanh.pop %v190
    %v193 = vtanh.pop %v191
    %v194 = vmul.f32 %v192, 0.5
    %v195 = vmul.f32 %v193, 0.5
    %v196 = vadd.f32 %v194, 0.5
    %v197 = vadd.f32 %v195, 0.5
    %v200 = vrot.slane %v197, 6
    %vm201 = vcmask 1041408
    %v202 = vsel %vm201, %v196, %v200
    %vm204 = vcmask 519170
    %vm205 = vmor %vm204, %vm201
    %206 = vst.msk [vmem:[#allocation2] sm:$0xf] %vm205, %v202
    // Predicated region
    $region22: #{tpu_custom_call.1} parent=1 // pred_check
      _
    $region23: #{tpu_custom_call.1} parent=1 // pred_check_branch
      %208 = sbr.rel (0) target = $region25
    $region24: #{tpu_custom_call.1} parent=1 // pred_region
      %210 = vsyncadd [#allocation3], 0
      %s212 = sshll.u32 [#allocation2], 4
      %s213 = int_to_ptr.vmem [resolvable:$true] %s212
      %s214 = sshll.u32 %s5, 4
      %s215 = int_to_ptr.hbm [resolvable:$true] %s214
      %217 = dma.vmem_to_hbm [thread:$0]  %s213, 64, %s215, [#allocation3]
    $region25: #{tpu_custom_call.1} parent=1 // pred_fallthru
      _
    // Predicated region
    $region26: #{tpu_custom_call.1} parent=1 // pred_check
      _
    $region27: #{tpu_custom_call.1} parent=1 // pred_check_branch
      %219 = sbr.rel (0) target = $region29
    $region28: #{tpu_custom_call.1} parent=1 // pred_region
      %221 = dma.done [#allocation3], 64
    $region29: #{tpu_custom_call.1} parent=1 // pred_fallthru
      _
    %222 = vsyncpa [#allocation3], 1

</llo_original>
